<compile_context>
chip_gen: v6e
topology: v6e:2x2x1
jax: 0.10.0
libtpu: 0.0.40
codegen_flags: <defaults>
</compile_context>

<pallas_src>
import functools

import jax
import jax.numpy as jnp
from jax.experimental import pallas as pl
from jax.experimental.pallas import tpu as pltpu

LANES = 128
SUBLANES = 8
MAX_BLOCK_ROWS = 8192   # (8192, 128) f32 tile == 4 MiB per input per buffer
_PAD_LOGIT = -1e4       # sigmoid(_PAD_LOGIT) == 0 exactly in f32 (tanh saturates)


def _iou_reduce_kernel(x_ref, t_ref, inter_ref, total_ref,
                       acc_i_ref, acc_t_ref, *, num_blocks, tail_rows):
    c = pl.program_id(0)                 # core split ("parallel")
    j = pl.program_id(1)                 # reduction step ("arbitrary")
    nb_per_split = pl.num_programs(1)
    vblock = c * nb_per_split + j        # virtual (global) block id

    @pl.when(j == 0)
    def _():
        acc_i_ref[...] = jnp.zeros_like(acc_i_ref)
        acc_t_ref[...] = jnp.zeros_like(acc_t_ref)

    block_rows = x_ref.shape[0]

    def accumulate(mask_tail_rows):
        x = x_ref[...].astype(jnp.float32)
        t = t_ref[...].astype(jnp.float32)
        # Exact sigmoid via a single EUP tanh; VPU only sees mul / mul-add.
        s = 0.5 * jnp.tanh(0.5 * x) + 0.5
        inter = s * t
        tot = s + t
        if mask_tail_rows:
            # Only the partial edge block masks its unspecified rows, and the
            # mask is applied before the reshape-sum so garbage never enters
            # the accumulator.
            row_ids = jax.lax.broadcasted_iota(jnp.int32, (block_rows, LANES), 0)
            valid = row_ids < tail_rows
            inter = jnp.where(valid, inter, 0.0)
            tot = jnp.where(valid, tot, 0.0)
        # (block_rows,128) -> (block_rows//8, 8, 128) is tile-aligned (no
        # VMEM copy); the axis-0 sum is a full-vreg VPU add tree into the
        # tiny (8,128) accumulators (no full-block accumulator load/store).
        acc_i_ref[...] += inter.reshape(-1, SUBLANES, LANES).sum(axis=0)
        acc_t_ref[...] += tot.reshape(-1, SUBLANES, LANES).sum(axis=0)

    last_real = num_blocks - 1
    if tail_rows < block_rows:
        # Interior blocks: no per-element mask at all.
        @pl.when(vblock < last_real)
        def _():
            accumulate(False)

        # Single tail block: row-masked partial edge block.
        @pl.when(vblock == last_real)
        def _():
            accumulate(True)
    else:
        # No partial tail: every real block is full; clamped "virtual"
        # blocks of an uneven 2-way split skip accumulation entirely.
        @pl.when(vblock <= last_real)
        def _():
            accumulate(False)

    # Epilogue: dump the (8,128) partial accumulators into the lane-dense
    # (1, 8, 128) output block; the wrapper does the final tiny reduce.
    @pl.when(j == nb_per_split - 1)
    def _():
        inter_ref[...] = acc_i_ref[...].reshape(1, SUBLANES, LANES)
        total_ref[...] = acc_t_ref[...].reshape(1, SUBLANES, LANES)


def _tensorcores_per_chip():
    """Best-effort TensorCore count (2 on v7x, 1 on v5e/v6e).

    Any value >= 1 is correct; this only trims the wasted second sweep on
    single-core chips.  Falls back to 2 if it cannot be determined.
    """
    try:
        info = pltpu.get_tpu_info()
        for attr in ("num_cores", "core_count", "tensorcore_count",
                     "num_tensorcores", "cores_per_chip"):
            v = getattr(info, attr, None)
            if v is not None:
                v = int(v)
                if v >= 1:
                    return min(v, 2)
    except Exception:
        pass
    try:
        d = jax.devices()[0]
        for attr in ("num_cores", "core_count"):
            v = getattr(d, attr, None)
            if v is not None:
                v = int(v)
                if v >= 1:
                    return min(v, 2)
    except Exception:
        pass
    return 2


@functools.partial(jax.jit, static_argnames=("smooth",))
def iou_loss(inputs, targets, smooth=1.0):
    """Pallas equivalent of IoULoss.forward(inputs, targets, smooth)."""
    x = inputs.reshape(-1)
    t = targets.reshape(-1)
    n = x.shape[0]

    # Pad to a whole number of vreg tiles.  x is padded with a large negative
    # logit (sigmoid == 0 exactly) and targets with 0, so padded elements
    # contribute nothing to either sum and no per-element mask is needed.
    # Sub-32-bit dtypes keep rows a multiple of 16 (bf16 sublane packing).
    min_rows = SUBLANES
    if (jnp.dtype(x.dtype).itemsize < 4) or (jnp.dtype(t.dtype).itemsize < 4):
        min_rows = 2 * SUBLANES
    min_tile = min_rows * LANES
    n_pad = ((n + min_tile - 1) // min_tile) * min_tile
    if n_pad != n:
        x = jnp.pad(x, (0, n_pad - n),
                    constant_values=jnp.asarray(_PAD_LOGIT, dtype=x.dtype))
        t = jnp.pad(t, (0, n_pad - n))

    rows = n_pad // LANES                          # multiple of min_rows
    x2 = x.reshape(rows, LANES)                    # free bitcast when aligned
    t2 = t.reshape(rows, LANES)

    block_rows = min(MAX_BLOCK_ROWS, rows)
    num_blocks = (rows + block_rows - 1) // block_rows
    num_splits = 1 if num_blocks < 2 else min(_tensorcores_per_chip(), 2)
    nb_per_split = (num_blocks + num_splits - 1) // num_splits
    tail_rows = rows - (num_blocks - 1) * block_rows   # rows in the last block

    # Row-block index for grid point (c, j); clamped so the "virtual" blocks
    # of an uneven split never DMA out of bounds (the clamped index equals
    # the previous step's block, so the pipeline reuses the resident buffer,
    # and the kernel skips their compute entirely).
    def in_map(c, j):
        return (jnp.minimum(c * nb_per_split + j, num_blocks - 1), 0)

    def out_map(c, j):
        return (c, 0, 0)

    kernel = functools.partial(_iou_reduce_kernel,
                               num_blocks=num_blocks, tail_rows=tail_rows)

    bytes_in = n_pad * (int(jnp.dtype(x2.dtype).itemsize)
                        + int(jnp.dtype(t2.dtype).itemsize))
    cost = pl.CostEstimate(
        flops=6 * n_pad,
        transcendentals=n_pad,
        bytes_accessed=int(bytes_in + 2 * num_splits * SUBLANES * LANES * 4),
    )

    inter_parts, total_parts = pl.pallas_call(
        kernel,
        out_shape=(
            jax.ShapeDtypeStruct((num_splits, SUBLANES, LANES), jnp.float32),
            jax.ShapeDtypeStruct((num_splits, SUBLANES, LANES), jnp.float32),
        ),
        grid_spec=pltpu.PrefetchScalarGridSpec(
            num_scalar_prefetch=0,
            grid=(num_splits, nb_per_split),
            in_specs=[
                pl.BlockSpec((block_rows, LANES), in_map),
                pl.BlockSpec((block_rows, LANES), in_map),
            ],
            out_specs=[
                pl.BlockSpec((1, SUBLANES, LANES), out_map),
                pl.BlockSpec((1, SUBLANES, LANES), out_map),
            ],
            scratch_shapes=[
                pltpu.VMEM((SUBLANES, LANES), jnp.float32),
                pltpu.VMEM((SUBLANES, LANES), jnp.float32),
            ],
        ),
        compiler_params=pltpu.CompilerParams(
            # "parallel" is intended to shard the 2-way split across the v7x
            # TensorCores.
            # TODO(synk): verify on an xprof trace; if it does not shard,
            # switch the leading axis to pltpu.CORE_PARALLEL.
            dimension_semantics=("parallel", "arbitrary"),
            vmem_limit_bytes=32 * 1024 * 1024,
        ),
        cost_estimate=cost,
    )(x2, t2)

    intersection = jnp.sum(inter_parts)
    total_sum = jnp.sum(total_parts)
    union = total_sum - intersection
    iou = (intersection + smooth) / (union + smooth)
    return 1.0 - iou


def _reference_iou_loss(inputs, targets, smooth=1.0):
    x = jax.nn.sigmoid(inputs.astype(jnp.float32)).reshape(-1)
    t = targets.astype(jnp.float32).reshape(-1)
    intersection = jnp.sum(x * t)
    total = jnp.sum(x + t)
    union = total - intersection
    return 1.0 - (intersection + smooth) / (union + smooth)


if __name__ == "__main__":
    key = jax.random.PRNGKey(0)
    k1, k2, k3, k4 = jax.random.split(key, 4)

    # Case 1: small NCHW shapes consistent with the module
    # (batch=2, channels=4, spatial=16x16).  Single block, single split.
    shape_small = (2, 4, 16, 16)
    inputs_small = jax.random.normal(k1, shape_small, dtype=jnp.float32)   # logits
    targets_small = (jax.random.uniform(k2, shape_small) > 0.5).astype(jnp.float32)

    loss_small = jax.block_until_ready(iou_loss(inputs_small, targets_small, smooth=1.0))
    ref_small = _reference_iou_loss(inputs_small, targets_small, smooth=1.0)
    assert jnp.allclose(loss_small, ref_small, atol=1e-4, rtol=1e-4), (loss_small, ref_small)

    # Case 2: larger, unaligned size exercising sentinel padding, multiple
    # blocks, the row-masked partial tail block and (with 3 blocks and a
    # 2-way split) the clamped "virtual" block skip path.
    shape_big = (16, 4, 190, 190)   # 2,310,400 elements, not a multiple of 1024
    inputs_big = jax.random.normal(k3, shape_big, dtype=jnp.float32)
    targets_big = (jax.random.uniform(k4, shape_big) > 0.5).astype(jnp.float32)

    loss_big = jax.block_until_ready(iou_loss(inputs_big, targets_big, smooth=1.0))
    ref_big = _reference_iou_loss(inputs_big, targets_big, smooth=1.0)
    assert jnp.allclose(loss_big, ref_big, atol=1e-4, rtol=1e-4), (loss_big, ref_big)

    print("KERNEL_OK")
</pallas_src>

<mosaic_0001>
module attributes {stable_mosaic.version = 11 : i64} {
  func.func @_iou_reduce_kernel(%arg0: i32, %arg1: i32, %arg2: memref<16x128xf32, #tpu.memory_space<vmem>>, %arg3: memref<16x128xf32, #tpu.memory_space<vmem>>, %arg4: memref<1x8x128xf32, #tpu.memory_space<vmem>>, %arg5: memref<1x8x128xf32, #tpu.memory_space<vmem>>, %arg6: memref<8x128xf32, #tpu.memory_space<vmem>>, %arg7: memref<8x128xf32, #tpu.memory_space<vmem>>) attributes {dimension_semantics = [#tpu.dimension_semantics<parallel>, #tpu.dimension_semantics<arbitrary>], iteration_bounds = array<i64: 1, 1>, scalar_prefetch = 0 : i64, scratch_operands = 2 : i64, tpu.core_type = #tpu.core_type<tc>, window_params = [{transform_indices = @transform_0, window_bounds = array<i64: 16, 128>}, {transform_indices = @transform_1, window_bounds = array<i64: 16, 128>}, {transform_indices = @transform_2, window_bounds = array<i64: 1, 8, 128>}, {transform_indices = @transform_3, window_bounds = array<i64: 1, 8, 128>}]} {
    %c1_i32 = arith.constant 1 : i32
    %0 = arith.muli %arg0, %c1_i32 : i32
    %1 = arith.addi %0, %arg1 : i32
    %c0_i32 = arith.constant 0 : i32
    %2 = arith.cmpi eq, %arg1, %c0_i32 : i32
    %3 = arith.extui %2 : i1 to i32
    %c0_i32_0 = arith.constant 0 : i32
    %4 = arith.cmpi ne, %3, %c0_i32_0 : i32
    scf.if %4 {
      %cst = arith.constant 0.000000e+00 : f32
      %11 = vector.broadcast %cst : f32 to vector<8x128xf32>
      %c0 = arith.constant 0 : index
      %c0_5 = arith.constant 0 : index
      %12 = vector.load %arg6[%c0, %c0_5] : memref<8x128xf32, #tpu.memory_space<vmem>>, vector<8x128xf32>
      tpu.vector_store %arg6[%c0, %c0_5], %11 {strides = array<i32>} : memref<8x128xf32, #tpu.memory_space<vmem>>, vector<8x128xf32>,
      %cst_6 = arith.constant 0.000000e+00 : f32
      %13 = vector.broadcast %cst_6 : f32 to vector<8x128xf32>
      %c0_7 = arith.constant 0 : index
      %c0_8 = arith.constant 0 : index
      %14 = vector.load %arg7[%c0_7, %c0_8] : memref<8x128xf32, #tpu.memory_space<vmem>>, vector<8x128xf32>
      tpu.vector_store %arg7[%c0_7, %c0_8], %13 {strides = array<i32>} : memref<8x128xf32, #tpu.memory_space<vmem>>, vector<8x128xf32>,
    } else {
    }
    %c0_i32_1 = arith.constant 0 : i32
    %5 = arith.cmpi sle, %1, %c0_i32_1 : i32
    %6 = arith.extui %5 : i1 to i32
    %c0_i32_2 = arith.constant 0 : i32
    %7 = arith.cmpi ne, %6, %c0_i32_2 : i32
    scf.if %7 {
      %c0 = arith.constant 0 : index
      %c0_5 = arith.constant 0 : index
      %11 = vector.load %arg2[%c0, %c0_5] : memref<16x128xf32, #tpu.memory_space<vmem>>, vector<16x128xf32>
      %c0_6 = arith.constant 0 : index
      %c0_7 = arith.constant 0 : index
      %12 = vector.load %arg3[%c0_6, %c0_7] : memref<16x128xf32, #tpu.memory_space<vmem>>, vector<16x128xf32>
      %cst = arith.constant 5.000000e-01 : f32
      %13 = vector.broadcast %cst : f32 to vector<16x128xf32>
      %14 = arith.mulf %13, %11 : vector<16x128xf32>
      %15 = math.tanh %14 : vector<16x128xf32>
      %cst_8 = arith.constant 5.000000e-01 : f32
      %16 = vector.broadcast %cst_8 : f32 to vector<16x128xf32>
      %17 = arith.mulf %16, %15 : vector<16x128xf32>
      %cst_9 = arith.constant 5.000000e-01 : f32
      %18 = vector.broadcast %cst_9 : f32 to vector<16x128xf32>
      %19 = arith.addf %17, %18 : vector<16x128xf32>
      %20 = arith.mulf %19, %12 : vector<16x128xf32>
      %21 = arith.addf %19, %12 : vector<16x128xf32>
      %c0_10 = arith.constant 0 : index
      %c0_11 = arith.constant 0 : index
      %22 = vector.load %arg6[%c0_10, %c0_11] : memref<8x128xf32, #tpu.memory_space<vmem>>, vector<8x128xf32>
      %23 = vector.shape_cast %20 : vector<16x128xf32> to vector<2x8x128xf32>
      %cst_12 = arith.constant dense<0.000000e+00> : vector<8x128xf32>
      %24 = vector.multi_reduction <add>, %23, %cst_12 [0] : vector<2x8x128xf32> to vector<8x128xf32>
      %25 = arith.addf %22, %24 : vector<8x128xf32>
      %c0_13 = arith.constant 0 : index
      %c0_14 = arith.constant 0 : index
      %26 = vector.load %arg6[%c0_13, %c0_14] : memref<8x128xf32, #tpu.memory_space<vmem>>, vector<8x128xf32>
      tpu.vector_store %arg6[%c0_13, %c0_14], %25 {strides = array<i32>} : memref<8x128xf32, #tpu.memory_space<vmem>>, vector<8x128xf32>,
      %c0_15 = arith.constant 0 : index
      %c0_16 = arith.constant 0 : index
      %27 = vector.load %arg7[%c0_15, %c0_16] : memref<8x128xf32, #tpu.memory_space<vmem>>, vector<8x128xf32>
      %28 = vector.shape_cast %21 : vector<16x128xf32> to vector<2x8x128xf32>
      %cst_17 = arith.constant dense<0.000000e+00> : vector<8x128xf32>
      %29 = vector.multi_reduction <add>, %28, %cst_17 [0] : vector<2x8x128xf32> to vector<8x128xf32>
      %30 = arith.addf %27, %29 : vector<8x128xf32>
      %c0_18 = arith.constant 0 : index
      %c0_19 = arith.constant 0 : index
      %31 = vector.load %arg7[%c0_18, %c0_19] : memref<8x128xf32, #tpu.memory_space<vmem>>, vector<8x128xf32>
      tpu.vector_store %arg7[%c0_18, %c0_19], %30 {strides = array<i32>} : memref<8x128xf32, #tpu.memory_space<vmem>>, vector<8x128xf32>,
    } else {
    }
    %c0_i32_3 = arith.constant 0 : i32
    %8 = arith.cmpi eq, %arg1, %c0_i32_3 : i32
    %9 = arith.extui %8 : i1 to i32
    %c0_i32_4 = arith.constant 0 : i32
    %10 = arith.cmpi ne, %9, %c0_i32_4 : i32
    scf.if %10 {
      %c0 = arith.constant 0 : index
      %c0_5 = arith.constant 0 : index
      %11 = vector.load %arg6[%c0, %c0_5] : memref<8x128xf32, #tpu.memory_space<vmem>>, vector<8x128xf32>
      %12 = vector.shape_cast %11 : vector<8x128xf32> to vector<1x8x128xf32>
      %c0_6 = arith.constant 0 : index
      %c0_7 = arith.constant 0 : index
      %c0_8 = arith.constant 0 : index
      %13 = vector.load %arg4[%c0_6, %c0_7, %c0_8] : memref<1x8x128xf32, #tpu.memory_space<vmem>>, vector<1x8x128xf32>
      tpu.vector_store %arg4[%c0_6, %c0_7, %c0_8], %12 {strides = array<i32>} : memref<1x8x128xf32, #tpu.memory_space<vmem>>, vector<1x8x128xf32>,
      %c0_9 = arith.constant 0 : index
      %c0_10 = arith.constant 0 : index
      %14 = vector.load %arg7[%c0_9, %c0_10] : memref<8x128xf32, #tpu.memory_space<vmem>>, vector<8x128xf32>
      %15 = vector.shape_cast %14 : vector<8x128xf32> to vector<1x8x128xf32>
      %c0_11 = arith.constant 0 : index
      %c0_12 = arith.constant 0 : index
      %c0_13 = arith.constant 0 : index
      %16 = vector.load %arg5[%c0_11, %c0_12, %c0_13] : memref<1x8x128xf32, #tpu.memory_space<vmem>>, vector<1x8x128xf32>
      tpu.vector_store %arg5[%c0_11, %c0_12, %c0_13], %15 {strides = array<i32>} : memref<1x8x128xf32, #tpu.memory_space<vmem>>, vector<1x8x128xf32>,
    } else {
    }
    return
  }
  func.func @transform_0(%arg0: i32, %arg1: i32) -> (i32, i32) {
    %c1_i32 = arith.constant 1 : i32
    %0 = arith.muli %arg0, %c1_i32 : i32
    %1 = arith.addi %0, %arg1 : i32
    %c0_i32 = arith.constant 0 : i32
    %2 = arith.minsi %1, %c0_i32 : i32
    %c0_i32_0 = arith.constant 0 : i32
    %c0_i32_1 = arith.constant 0 : i32
    return %2, %c0_i32_0 : i32, i32
  }
  func.func @transform_1(%arg0: i32, %arg1: i32) -> (i32, i32) {
    %c1_i32 = arith.constant 1 : i32
    %0 = arith.muli %arg0, %c1_i32 : i32
    %1 = arith.addi %0, %arg1 : i32
    %c0_i32 = arith.constant 0 : i32
    %2 = arith.minsi %1, %c0_i32 : i32
    %c0_i32_0 = arith.constant 0 : i32
    %c0_i32_1 = arith.constant 0 : i32
    return %2, %c0_i32_0 : i32, i32
  }
  func.func @transform_2(%arg0: i32, %arg1: i32) -> (i32, i32, i32) {
    %c0_i32 = arith.constant 0 : i32
    %c0_i32_0 = arith.constant 0 : i32
    %c0_i32_1 = arith.constant 0 : i32
    return %arg0, %c0_i32, %c0_i32_0 : i32, i32, i32
  }
  func.func @transform_3(%arg0: i32, %arg1: i32) -> (i32, i32, i32) {
    %c0_i32 = arith.constant 0 : i32
    %c0_i32_0 = arith.constant 0 : i32
    %c0_i32_1 = arith.constant 0 : i32
    return %arg0, %c0_i32, %c0_i32_0 : i32, i32, i32
  }
}

</mosaic_0001>

<llo_original>
// kernel: iou_loss.1
$region0: #{iou_loss.1}
  #allocation0 [shape = 'u32[]', space=smem, size = 0x4, offset = 0x4, fixed_abs, tag = 'smem constant byte address 0x4 - core index']
  #allocation1 [shape = 'u32[144,128]{1,0:T(1,128)}', space=vmem, size = 0x12000, scoped, tag = 'internal scratch']
  #allocation2 [shape = 'f32[8,128]{1,0:T(8,128)}', space=vmem, size = 0x1000, scoped, tag = 'scratch operand']
  #allocation3 [shape = 'f32[8,128]{1,0:T(8,128)}', space=vmem, size = 0x1000, scoped, tag = 'scratch operand']
  %s0 = inlined_call_operand.vmem [shape: f32[16,128], index: 0, kind: input, shape index: {}]
  %s1 = inlined_call_operand.vmem [shape: f32[16,128], index: 1, kind: input, shape index: {}]
  %s2 = inlined_call_operand.vmem [shape: f32[1,8,128], index: 2, kind: output, shape index: {0}]
  %s3 = inlined_call_operand.vmem [shape: f32[1,8,128], index: 3, kind: output, shape index: {1}]
  %4 = xla_tuple %s2, %s3
  %s5 = sld [smem:[#allocation0]]
  $region38: #{iou_loss.1} parent=0
    _
  %s7 = ssub.s32 1, %s5
  %s8 = scalar_select 0, %s7, %s5
  // Predicated region
  $region2: #{iou_loss.1} parent=0 // pred_check
    _
  $region3: #{iou_loss.1} parent=0 // pred_check_branch
    %10 = sbr.rel (0) target = $region5
  $region4: #{iou_loss.1} parent=0 // pred_region
    %s11 = sadd.s32 0, 0
    %p12 = scmp.lt.s32.totalorder %s11, 0
    %s13 = scalar_select %p12, %s11, 0
    %s14 = smul.u32 2, %s13
    %p15 = scmp.lt.s32.totalorder %s14, 1
    %s16 = scalar_select %p15, %s14, 1
    %s17 = smul.addr %s16, 8
    %s18 = scalar_lea.vmem %s0, %s17
    %s19 = sadd.s32 0, 0
    %p20 = scmp.lt.s32.totalorder %s19, 0
    %s21 = scalar_select %p20, %s19, 0
    %s22 = smul.u32 2, %s21
  $region5: #{iou_loss.1} parent=0 // pred_fallthru
    _
  // Predicated region
  $region6: #{iou_loss.1} parent=0 // pred_check
    _
  $region7: #{iou_loss.1} parent=0 // pred_check_branch
    %24 = sbr.rel (0) target = $region9
  $region8: #{iou_loss.1} parent=0 // pred_region
    %s25 = sadd.s32 0, 0
    %p26 = scmp.lt.s32.totalorder %s25, 0
    %s27 = scalar_select %p26, %s25, 0
    %s28 = smul.u32 2, %s27
    %p29 = scmp.lt.s32.totalorder %s28, 1
    %s30 = scalar_select %p29, %s28, 1
    %s31 = smul.addr %s30, 8
    %s32 = scalar_lea.vmem %s1, %s31
    %s33 = sadd.s32 0, 0
    %p34 = scmp.lt.s32.totalorder %s33, 0
    %s35 = scalar_select %p34, %s33, 0
    %s36 = smul.u32 2, %s35
  $region9: #{iou_loss.1} parent=0 // pred_fallthru
    _
  %s37 = sadd.s32 0, 0
  %p38 = scmp.lt.s32.totalorder %s37, 0
  %s39 = scalar_select %p38, %s37, 0
  %s40 = smul.u32 2, %s39
  %p41 = scmp.lt.s32.totalorder %s40, 1
  %s42 = scalar_select %p41, %s40, 1
  %s43 = smul.addr %s42, 8
  %s44 = scalar_lea.vmem %s0, %s43
  %s45 = sadd.s32 0, 0
  %p46 = scmp.lt.s32.totalorder %s45, 0
  %s47 = scalar_select %p46, %s45, 0
  %s48 = smul.u32 2, %s47
  %p49 = scmp.lt.s32.totalorder %s48, 1
  %s50 = scalar_select %p49, %s48, 1
  %s51 = smul.addr %s50, 8
  %s52 = scalar_lea.vmem %s1, %s51
  %s53 = sadd.s32 0, 0
  %p54 = scmp.lt.s32.totalorder %s53, 0
  %s55 = scalar_select %p54, %s53, 0
  %s56 = smul.u32 2, %s55
  %p57 = scmp.lt.s32.totalorder %s56, 1
  %s58 = scalar_select %p57, %s56, 1
  %s59 = smul.addr %s58, 8
  %s60 = scalar_lea.vmem %s0, %s59
  %s61 = sadd.s32 0, 0
  %p62 = scmp.lt.s32.totalorder %s61, 0
  %s63 = scalar_select %p62, %s61, 0
  %s64 = smul.u32 2, %s63
  %s65 = sadd.s32 0, 0
  %p66 = scmp.lt.s32.totalorder %s65, 0
  %s67 = scalar_select %p66, %s65, 0
  %s68 = smul.u32 2, %s67
  %p69 = scmp.lt.s32.totalorder %s68, 1
  %s70 = scalar_select %p69, %s68, 1
  %s71 = smul.addr %s70, 8
  %s72 = scalar_lea.vmem %s1, %s71
  %s73 = sadd.s32 0, 0
  %p74 = scmp.lt.s32.totalorder %s73, 0
  %s75 = scalar_select %p74, %s73, 0
  %s76 = smul.u32 2, %s75
  %s77 = sadd.s32 0, 0
  %p78 = scmp.eq.s32.totalorder 0, 0
  // Predicated region
  $region10: #{iou_loss.1} parent=0 // pred_check
    %p79 = pneg %p78
  $region11: #{iou_loss.1} parent=0 // pred_check_branch
    %81 = sbr.rel (%p79) target = $region13
  $region12: #{iou_loss.1} parent=0 // pred_region
    %82 = vst [vmem:[#allocation2] sm:$0xff] 0.0
    %83 = vst [vmem:[#allocation3] sm:$0xff] 0.0
  $region13: #{iou_loss.1} parent=0 // pred_fallthru
    _
  %p84 = scmp.le.s32.totalorder %s77, 0
  // Predicated region
  $region14: #{iou_loss.1} parent=0 // pred_check
    %p85 = pneg %p84
  $region15: #{iou_loss.1} parent=0 // pred_check_branch
    %87 = sbr.rel (%p85) target = $region17
  $region16: #{iou_loss.1} parent=0 // pred_region
    %v88 = vld [vmem:[%s60] sm:$0xff]
    %v89 = vld [vmem:[%s60 + $0x8] sm:$0xff]
    %v90 = vld [vmem:[%s72] sm:$0xff]
    %v91 = vld [vmem:[%s72 + $0x8] sm:$0xff]
    %v92 = vmul.f32 %v88, 0.5
    %v93 = vmul.f32 %v89, 0.5
    %v94 = vtanh.pop %v92
    %v95 = vtanh.pop %v93
    %v96 = vmul.f32 %v94, 0.5
    %v97 = vmul.f32 %v95, 0.5
    %v98 = vadd.f32 %v96, 0.5
    %v99 = vadd.f32 %v97, 0.5
    %v100 = vmul.f32 %v98, %v90
    %v101 = vmul.f32 %v99, %v91
    %v102 = vadd.f32 %v98, %v90
    %v103 = vadd.f32 %v99, %v91
    %v104 = vld [vmem:[#allocation2] sm:$0xff]
    %v105 = vadd.f32 %v100, %v101
    %v106 = vadd.f32 %v104, %v105
    %107 = vst [vmem:[#allocation2] sm:$0xff] %v106
    %v108 = vld [vmem:[#allocation3] sm:$0xff]
    %v109 = vadd.f32 %v102, %v103
    %v110 = vadd.f32 %v108, %v109
    %111 = vst [vmem:[#allocation3] sm:$0xff] %v110
  $region17: #{iou_loss.1} parent=0 // pred_fallthru
    _
  // Predicated region
  $region18: #{iou_loss.1} parent=0 // pred_check
    %p112 = pneg %p78
  $region19: #{iou_loss.1} parent=0 // pred_check_branch
    %114 = sbr.rel (%p112) target = $region21
  $region20: #{iou_loss.1} parent=0 // pred_region
    %v115 = vld [vmem:[#allocation2] sm:$0xff]
    %116 = vst [vmem:[%s2] sm:$0xff] %v115
    %v117 = vld [vmem:[#allocation3] sm:$0xff]
    %118 = vst [vmem:[%s3] sm:$0xff] %v117
  $region21: #{iou_loss.1} parent=0 // pred_fallthru
    _
  // Predicated region
  $region22: #{iou_loss.1} parent=0 // pred_check
    _
  $region23: #{iou_loss.1} parent=0 // pred_check_branch
    %120 = sbr.rel (0) target = $region25
  $region24: #{iou_loss.1} parent=0 // pred_region
    _
  $region25: #{iou_loss.1} parent=0 // pred_fallthru
    _
  // Predicated region
  $region26: #{iou_loss.1} parent=0 // pred_check
    _
  $region27: #{iou_loss.1} parent=0 // pred_check_branch
    %122 = sbr.rel (0) target = $region29
  $region28: #{iou_loss.1} parent=0 // pred_region
    _
  $region29: #{iou_loss.1} parent=0 // pred_fallthru
    _
  // Predicated region
  $region30: #{iou_loss.1} parent=0 // pred_check
    _
  $region31: #{iou_loss.1} parent=0 // pred_check_branch
    %124 = sbr.rel (0) target = $region33
  $region32: #{iou_loss.1} parent=0 // pred_region
    _
  $region33: #{iou_loss.1} parent=0 // pred_fallthru
    _
  // Predicated region
  $region34: #{iou_loss.1} parent=0 // pred_check
    _
  $region35: #{iou_loss.1} parent=0 // pred_check_branch
    %126 = sbr.rel (0) target = $region37
  $region36: #{iou_loss.1} parent=0 // pred_region
    _
  $region37: #{iou_loss.1} parent=0 // pred_fallthru
    _

</llo_original>
